<compile_context>
chip_gen: v7x
topology: tpu7x:2x2x1
jax: 0.10.0
libtpu: 0.0.40
codegen_flags: <defaults>
</compile_context>

<pallas_src>
import functools

import jax
import jax.numpy as jnp
from jax import lax
from jax.experimental import pallas as pl
from jax.experimental.pallas import tpu as pltpu

EPS = 1e-5  # nn.InstanceNorm2d default eps


def _round_up(v, m):
    return -(-v // m) * m


def residual_block_kernel(x_ref, w_ref, out_ref, slab_ref, xcat_ref, *, H, W,
                          matmul_dtype):
    # x_ref:    (nb, C, HW)        f32   lane-dense flat spatial, per image
    # w_ref:    (C, 9*C_pad)       matmul_dtype, K ordered (tap, padded c_in)
    # out_ref:  (nb, C, HW)        f32
    # slab_ref: (9*C_pad, nb*HW)   matmul_dtype   im2col patch slab (scratch)
    # xcat_ref: (C_pad, nb*HW)     f32            lane-concatenated images (scratch)
    nb, C, HW = x_ref.shape
    C_pad, L = xcat_ref.shape                     # L == nb * HW

    # --- Lane-concatenate the nb images; keep padded channel rows zero. ------
    if C_pad > C:
        xcat_ref[C:, :] = jnp.zeros((C_pad - C, L), jnp.float32)
    for n in range(nb):
        xcat_ref[:C, n * HW:(n + 1) * HW] = x_ref[n]
    xcat = xcat_ref[...]                          # (C_pad, L) f32

    # --- Per-lane (h, w) position within its image (hoisted, once per step). -
    p_full = lax.broadcasted_iota(jnp.int32, (1, L), 1)
    p = jnp.bitwise_and(p_full, HW - 1) if (HW & (HW - 1)) == 0 else p_full % HW
    if (W & (W - 1)) == 0:
        h = jnp.right_shift(p, W.bit_length() - 1)
        w = jnp.bitwise_and(p, W - 1)
    else:
        h = p // W
        w = p % W

    # --- im2col: per tap ONE roll + select + aligned wide store (all images). -
    for k in range(9):
        dy, dx = k // 3 - 1, k % 3 - 1
        s = dy * W + dx                           # source flat offset
        if s == 0:                                # center tap: no roll, no mask
            tap = xcat
        else:
            rolled = pltpu.roll(xcat, (-s) % L, axis=1)
            conds = []
            if dy < 0:
                conds.append(h >= -dy)
            if dy > 0:
                conds.append(h < H - dy)
            if dx < 0:
                conds.append(w >= -dx)
            if dx > 0:
                conds.append(w < W - dx)
            valid = conds[0]
            for c in conds[1:]:
                valid = valid & c
            # Cross-image wraparound positions (|s| <= W+1) are exactly the
            # positions this padding mask zeroes (3x3 / stride 1 / pad 1 only).
            tap = jnp.where(valid, rolled, 0.0)
        slab_ref[k * C_pad:(k + 1) * C_pad, :] = tap.astype(matmul_dtype)

    # --- Conv for ALL nb images: one MXU matmul, f32 accumulation. -----------
    prec = (lax.Precision.HIGHEST if matmul_dtype == jnp.float32
            else lax.Precision.DEFAULT)
    acc = jnp.dot(w_ref[...], slab_ref[...],
                  preferred_element_type=jnp.float32, precision=prec)
    # (Conv bias omitted: it cancels exactly in the affine-free InstanceNorm mean.)

    # --- InstanceNorm2d (affine=False, biased var) + ReLU + residual, per image.
    for n in range(nb):
        a = acc[:, n * HW:(n + 1) * HW]           # (C, HW) f32, lane-aligned slice
        mean = jnp.mean(a, axis=-1, keepdims=True)
        centered = a - mean
        var = jnp.mean(centered * centered, axis=-1, keepdims=True)
        y = jnp.maximum(centered * lax.rsqrt(var + EPS), 0.0)
        x_n = xcat[:C, n * HW:(n + 1) * HW]       # original f32 input (residual)
        out_ref[n] = (x_n + y).astype(out_ref.dtype)


def residual_block(x, w, b, *, matmul_dtype=jnp.bfloat16, nb=None):
    """x: (N, C, H, W) f32; w: (C, C, 3, 3); b: (C,) (cancels under InstanceNorm)."""
    del b  # per-channel constant -> removed exactly by affine-free InstanceNorm
    N, C, H, W = x.shape
    HW = H * W
    C_pad = _round_up(C, 8)   # 8-sublane-aligned tap row blocks in the slab

    if nb is None:
        # Prefer a grid of >= 2 steps (keeps both v7x TensorCores busy); on
        # single-TC v5e/v6e a larger nb (override) amortizes per-step overhead.
        nb = next((c for c in (8, 4, 2, 1) if N % c == 0 and N // c >= 2), None)
        if nb is None:
            nb = next(c for c in (8, 4, 2, 1) if N % c == 0)
    assert N % nb == 0
    L = nb * HW

    x_flat = x.reshape(N, C, HW)                       # free reshape, lane-dense
    # (c_out, c_in, ky, kx) -> (c_out, ky, kx, c_in[padded]) -> (c_out, 9*C_pad)
    w_t = jnp.transpose(w, (0, 2, 3, 1))
    if C_pad > C:
        w_t = jnp.pad(w_t, ((0, 0), (0, 0), (0, 0), (0, C_pad - C)))
    w2 = w_t.reshape(C, 9 * C_pad).astype(matmul_dtype)

    mm = jnp.dtype(matmul_dtype).itemsize
    work = (2 * 2 * nb * C * HW * 4          # double-buffered in + out blocks
            + 9 * C_pad * L * mm             # im2col slab scratch
            + C_pad * L * 4                  # lane-concatenated input scratch
            + 2 * C * 9 * C_pad * mm)        # weight slab (double-buffered)
    vmem_limit = int(min(max(2 * work, 4 << 20), 64 << 20))

    kernel = functools.partial(residual_block_kernel, H=H, W=W,
                               matmul_dtype=matmul_dtype)
    out = pl.pallas_call(
        kernel,
        out_shape=jax.ShapeDtypeStruct((N, C, HW), x.dtype),
        grid=(N // nb,),
        in_specs=[
            pl.BlockSpec((nb, C, HW), lambda i: (i, 0, 0)),
            pl.BlockSpec((C, 9 * C_pad), lambda i: (0, 0)),
        ],
        out_specs=pl.BlockSpec((nb, C, HW), lambda i: (i, 0, 0)),
        scratch_shapes=[
            pltpu.VMEM((9 * C_pad, L), matmul_dtype),
            pltpu.VMEM((C_pad, L), jnp.float32),
        ],
        compiler_params=pltpu.CompilerParams(
            dimension_semantics=("parallel",),
            vmem_limit_bytes=vmem_limit,
        ),
    )(x_flat, w2)
    # TODO(synk): for production sizes (C >= 128 / large H*W) add a C_out grid axis
    # with MXU-native M/K tiles (128 on v5e, 256 on v6e/v7x) and budget block sizes
    # explicitly for v7x's 64 MiB VMEM vs v5e/v6e's 128 MiB.
    return out.reshape(N, C, H, W)


def residual_block_ref(x, w, b, *, conv_dtype=jnp.float32):
    """Pure-JAX reference of the PyTorch module (optionally bf16 conv operands)."""
    conv = lax.conv_general_dilated(
        x.astype(conv_dtype), w.astype(conv_dtype),
        window_strides=(1, 1), padding=((1, 1), (1, 1)),
        dimension_numbers=("NCHW", "OIHW", "NCHW"),
        preferred_element_type=jnp.float32,
        precision=lax.Precision.HIGHEST)
    conv = conv + b[None, :, None, None]
    mean = jnp.mean(conv, axis=(2, 3), keepdims=True)
    var = jnp.mean((conv - mean) ** 2, axis=(2, 3), keepdims=True)
    normed = (conv - mean) * lax.rsqrt(var + EPS)
    return x + jnp.maximum(normed, 0.0)


if __name__ == "__main__":
    N, C, H, W = 2, 4, 16, 16
    key = jax.random.PRNGKey(0)
    kx, kw, kb = jax.random.split(key, 3)

    x = jax.random.normal(kx, (N, C, H, W), jnp.float32)

    # Deterministic synthetic params (Conv2d-style kaiming-uniform bounds).
    fan_in = C * 3 * 3
    bound = 1.0 / (fan_in ** 0.5)
    w = jax.random.uniform(kw, (C, C, 3, 3), jnp.float32, -bound, bound)
    b = jax.random.uniform(kb, (C,), jnp.float32, -bound, bound)

    # Strict f32-operand path vs f32 reference.
    ref_f32 = residual_block_ref(x, w, b)
    out_f32 = jax.block_until_ready(
        residual_block(x, w, b, matmul_dtype=jnp.float32))
    assert out_f32.shape == (N, C, H, W)
    assert jnp.allclose(out_f32, ref_f32, atol=1e-4, rtol=1e-4), \
        float(jnp.max(jnp.abs(out_f32 - ref_f32)))

    # Default bf16-operand path vs a bf16-operand reference (f32 accumulation).
    ref_bf16 = residual_block_ref(x, w, b, conv_dtype=jnp.bfloat16)
    out_bf16 = jax.block_until_ready(residual_block(x, w, b))
    assert out_bf16.shape == (N, C, H, W)
    assert jnp.allclose(out_bf16, ref_bf16, atol=2e-2, rtol=2e-2), \
        float(jnp.max(jnp.abs(out_bf16 - ref_bf16)))

    print("KERNEL_OK")
</pallas_src>

<mosaic_0001>
module attributes {stable_mosaic.version = 11 : i64} {
  func.func @residual_block_kernel(%arg0: i32, %arg1: memref<1x4x256xf32, #tpu.memory_space<vmem>>, %arg2: memref<4x72xf32, #tpu.memory_space<vmem>>, %arg3: memref<1x4x256xf32, #tpu.memory_space<vmem>>, %arg4: memref<72x256xf32, #tpu.memory_space<vmem>>, %arg5: memref<8x256xf32, #tpu.memory_space<vmem>>) attributes {dimension_semantics = [#tpu.dimension_semantics<parallel>], iteration_bounds = array<i64: 2>, scalar_prefetch = 0 : i64, scratch_operands = 2 : i64, tpu.core_type = #tpu.core_type<tc>, window_params = [{transform_indices = @transform_0, window_bounds = array<i64: 1, 4, 256>}, {pipeline_mode = #tpu.pipeline_mode<synchronous>, transform_indices = @transform_1, window_bounds = array<i64: 4, 72>}, {transform_indices = @transform_2, window_bounds = array<i64: 1, 4, 256>}]} {
    %cst = arith.constant 0.000000e+00 : f32
    %0 = vector.broadcast %cst : f32 to vector<4x256xf32>
    %c4 = arith.constant 4 : index
    %c0 = arith.constant 0 : index
    %1 = vector.load %arg5[%c4, %c0] : memref<8x256xf32, #tpu.memory_space<vmem>>, vector<4x256xf32>
    tpu.vector_store %arg5[%c4, %c0], %0 {strides = array<i32>} : memref<8x256xf32, #tpu.memory_space<vmem>>, vector<4x256xf32>,
    %c0_0 = arith.constant 0 : index
    %c0_1 = arith.constant 0 : index
    %c0_2 = arith.constant 0 : index
    %2 = vector.load %arg1[%c0_0, %c0_1, %c0_2] : memref<1x4x256xf32, #tpu.memory_space<vmem>>, vector<1x4x256xf32>
    %3 = vector.shape_cast %2 : vector<1x4x256xf32> to vector<4x256xf32>
    %c0_3 = arith.constant 0 : index
    %c0_4 = arith.constant 0 : index
    %4 = vector.load %arg5[%c0_3, %c0_4] : memref<8x256xf32, #tpu.memory_space<vmem>>, vector<4x256xf32>
    tpu.vector_store %arg5[%c0_3, %c0_4], %3 {strides = array<i32>} : memref<8x256xf32, #tpu.memory_space<vmem>>, vector<4x256xf32>,
    %c0_5 = arith.constant 0 : index
    %c0_6 = arith.constant 0 : index
    %5 = vector.load %arg5[%c0_5, %c0_6] : memref<8x256xf32, #tpu.memory_space<vmem>>, vector<8x256xf32>
    %6 = tpu.iota {dimensions = array<i32: 1>} : vector<1x256xi32>
    %c255_i32 = arith.constant 255 : i32
    %7 = vector.broadcast %c255_i32 : i32 to vector<1x256xi32>
    %8 = arith.andi %6, %7 : vector<1x256xi32>
    %c4_i32 = arith.constant 4 : i32
    %9 = vector.broadcast %c4_i32 : i32 to vector<1x256xi32>
    %10 = arith.shrsi %8, %9 : vector<1x256xi32>
    %c15_i32 = arith.constant 15 : i32
    %11 = vector.broadcast %c15_i32 : i32 to vector<1x256xi32>
    %12 = arith.andi %8, %11 : vector<1x256xi32>
    %c17_i32 = arith.constant 17 : i32
    %13 = tpu.dynamic_rotate %5 by %c17_i32 dim 1 : vector<8x256xf32>, i32 -> vector<8x256xf32>
    %c1_i32 = arith.constant 1 : i32
    %14 = vector.broadcast %c1_i32 : i32 to vector<1x256xi32>
    %15 = arith.cmpi sge, %10, %14 : vector<1x256xi32>
    %c1_i32_7 = arith.constant 1 : i32
    %16 = vector.broadcast %c1_i32_7 : i32 to vector<1x256xi32>
    %17 = arith.cmpi sge, %12, %16 : vector<1x256xi32>
    %18 = arith.andi %15, %17 : vector<1x256xi1>
    %cst_8 = arith.constant 0.000000e+00 : f32
    %19 = vector.shape_cast %18 : vector<1x256xi1> to vector<1x256xi1>
    %20 = vector.broadcast %19 : vector<1x256xi1> to vector<8x256xi1>
    %21 = vector.broadcast %cst_8 : f32 to vector<8x256xf32>
    %22 = arith.select %20, %13, %21 : vector<8x256xi1>, vector<8x256xf32>
    %c0_9 = arith.constant 0 : index
    %c0_10 = arith.constant 0 : index
    %23 = vector.load %arg4[%c0_9, %c0_10] : memref<72x256xf32, #tpu.memory_space<vmem>>, vector<8x256xf32>
    tpu.vector_store %arg4[%c0_9, %c0_10], %22 {strides = array<i32>} : memref<72x256xf32, #tpu.memory_space<vmem>>, vector<8x256xf32>,
    %c16_i32 = arith.constant 16 : i32
    %24 = tpu.dynamic_rotate %5 by %c16_i32 dim 1 : vector<8x256xf32>, i32 -> vector<8x256xf32>
    %c1_i32_11 = arith.constant 1 : i32
    %25 = vector.broadcast %c1_i32_11 : i32 to vector<1x256xi32>
    %26 = arith.cmpi sge, %10, %25 : vector<1x256xi32>
    %cst_12 = arith.constant 0.000000e+00 : f32
    %27 = vector.shape_cast %26 : vector<1x256xi1> to vector<1x256xi1>
    %28 = vector.broadcast %27 : vector<1x256xi1> to vector<8x256xi1>
    %29 = vector.broadcast %cst_12 : f32 to vector<8x256xf32>
    %30 = arith.select %28, %24, %29 : vector<8x256xi1>, vector<8x256xf32>
    %c8 = arith.constant 8 : index
    %c0_13 = arith.constant 0 : index
    %31 = vector.load %arg4[%c8, %c0_13] : memref<72x256xf32, #tpu.memory_space<vmem>>, vector<8x256xf32>
    tpu.vector_store %arg4[%c8, %c0_13], %30 {strides = array<i32>} : memref<72x256xf32, #tpu.memory_space<vmem>>, vector<8x256xf32>,
    %c15_i32_14 = arith.constant 15 : i32
    %32 = tpu.dynamic_rotate %5 by %c15_i32_14 dim 1 : vector<8x256xf32>, i32 -> vector<8x256xf32>
    %c1_i32_15 = arith.constant 1 : i32
    %33 = vector.broadcast %c1_i32_15 : i32 to vector<1x256xi32>
    %34 = arith.cmpi sge, %10, %33 : vector<1x256xi32>
    %c15_i32_16 = arith.constant 15 : i32
    %35 = vector.broadcast %c15_i32_16 : i32 to vector<1x256xi32>
    %36 = arith.cmpi slt, %12, %35 : vector<1x256xi32>
    %37 = arith.andi %34, %36 : vector<1x256xi1>
    %cst_17 = arith.constant 0.000000e+00 : f32
    %38 = vector.shape_cast %37 : vector<1x256xi1> to vector<1x256xi1>
    %39 = vector.broadcast %38 : vector<1x256xi1> to vector<8x256xi1>
    %40 = vector.broadcast %cst_17 : f32 to vector<8x256xf32>
    %41 = arith.select %39, %32, %40 : vector<8x256xi1>, vector<8x256xf32>
    %c16 = arith.constant 16 : index
    %c0_18 = arith.constant 0 : index
    %42 = vector.load %arg4[%c16, %c0_18] : memref<72x256xf32, #tpu.memory_space<vmem>>, vector<8x256xf32>
    tpu.vector_store %arg4[%c16, %c0_18], %41 {strides = array<i32>} : memref<72x256xf32, #tpu.memory_space<vmem>>, vector<8x256xf32>,
    %c1_i32_19 = arith.constant 1 : i32
    %43 = tpu.dynamic_rotate %5 by %c1_i32_19 dim 1 : vector<8x256xf32>, i32 -> vector<8x256xf32>
    %c1_i32_20 = arith.constant 1 : i32
    %44 = vector.broadcast %c1_i32_20 : i32 to vector<1x256xi32>
    %45 = arith.cmpi sge, %12, %44 : vector<1x256xi32>
    %cst_21 = arith.constant 0.000000e+00 : f32
    %46 = vector.shape_cast %45 : vector<1x256xi1> to vector<1x256xi1>
    %47 = vector.broadcast %46 : vector<1x256xi1> to vector<8x256xi1>
    %48 = vector.broadcast %cst_21 : f32 to vector<8x256xf32>
    %49 = arith.select %47, %43, %48 : vector<8x256xi1>, vector<8x256xf32>
    %c24 = arith.constant 24 : index
    %c0_22 = arith.constant 0 : index
    %50 = vector.load %arg4[%c24, %c0_22] : memref<72x256xf32, #tpu.memory_space<vmem>>, vector<8x256xf32>
    tpu.vector_store %arg4[%c24, %c0_22], %49 {strides = array<i32>} : memref<72x256xf32, #tpu.memory_space<vmem>>, vector<8x256xf32>,
    %c32 = arith.constant 32 : index
    %c0_23 = arith.constant 0 : index
    %51 = vector.load %arg4[%c32, %c0_23] : memref<72x256xf32, #tpu.memory_space<vmem>>, vector<8x256xf32>
    tpu.vector_store %arg4[%c32, %c0_23], %5 {strides = array<i32>} : memref<72x256xf32, #tpu.memory_space<vmem>>, vector<8x256xf32>,
    %c255_i32_24 = arith.constant 255 : i32
    %52 = tpu.dynamic_rotate %5 by %c255_i32_24 dim 1 : vector<8x256xf32>, i32 -> vector<8x256xf32>
    %c15_i32_25 = arith.constant 15 : i32
    %53 = vector.broadcast %c15_i32_25 : i32 to vector<1x256xi32>
    %54 = arith.cmpi slt, %12, %53 : vector<1x256xi32>
    %cst_26 = arith.constant 0.000000e+00 : f32
    %55 = vector.shape_cast %54 : vector<1x256xi1> to vector<1x256xi1>
    %56 = vector.broadcast %55 : vector<1x256xi1> to vector<8x256xi1>
    %57 = vector.broadcast %cst_26 : f32 to vector<8x256xf32>
    %58 = arith.select %56, %52, %57 : vector<8x256xi1>, vector<8x256xf32>
    %c40 = arith.constant 40 : index
    %c0_27 = arith.constant 0 : index
    %59 = vector.load %arg4[%c40, %c0_27] : memref<72x256xf32, #tpu.memory_space<vmem>>, vector<8x256xf32>
    tpu.vector_store %arg4[%c40, %c0_27], %58 {strides = array<i32>} : memref<72x256xf32, #tpu.memory_space<vmem>>, vector<8x256xf32>,
    %c241_i32 = arith.constant 241 : i32
    %60 = tpu.dynamic_rotate %5 by %c241_i32 dim 1 : vector<8x256xf32>, i32 -> vector<8x256xf32>
    %c15_i32_28 = arith.constant 15 : i32
    %61 = vector.broadcast %c15_i32_28 : i32 to vector<1x256xi32>
    %62 = arith.cmpi slt, %10, %61 : vector<1x256xi32>
    %c1_i32_29 = arith.constant 1 : i32
    %63 = vector.broadcast %c1_i32_29 : i32 to vector<1x256xi32>
    %64 = arith.cmpi sge, %12, %63 : vector<1x256xi32>
    %65 = arith.andi %62, %64 : vector<1x256xi1>
    %cst_30 = arith.constant 0.000000e+00 : f32
    %66 = vector.shape_cast %65 : vector<1x256xi1> to vector<1x256xi1>
    %67 = vector.broadcast %66 : vector<1x256xi1> to vector<8x256xi1>
    %68 = vector.broadcast %cst_30 : f32 to vector<8x256xf32>
    %69 = arith.select %67, %60, %68 : vector<8x256xi1>, vector<8x256xf32>
    %c48 = arith.constant 48 : index
    %c0_31 = arith.constant 0 : index
    %70 = vector.load %arg4[%c48, %c0_31] : memref<72x256xf32, #tpu.memory_space<vmem>>, vector<8x256xf32>
    tpu.vector_store %arg4[%c48, %c0_31], %69 {strides = array<i32>} : memref<72x256xf32, #tpu.memory_space<vmem>>, vector<8x256xf32>,
    %c240_i32 = arith.constant 240 : i32
    %71 = tpu.dynamic_rotate %5 by %c240_i32 dim 1 : vector<8x256xf32>, i32 -> vector<8x256xf32>
    %c15_i32_32 = arith.constant 15 : i32
    %72 = vector.broadcast %c15_i32_32 : i32 to vector<1x256xi32>
    %73 = arith.cmpi slt, %10, %72 : vector<1x256xi32>
    %cst_33 = arith.constant 0.000000e+00 : f32
    %74 = vector.shape_cast %73 : vector<1x256xi1> to vector<1x256xi1>
    %75 = vector.broadcast %74 : vector<1x256xi1> to vector<8x256xi1>
    %76 = vector.broadcast %cst_33 : f32 to vector<8x256xf32>
    %77 = arith.select %75, %71, %76 : vector<8x256xi1>, vector<8x256xf32>
    %c56 = arith.constant 56 : index
    %c0_34 = arith.constant 0 : index
    %78 = vector.load %arg4[%c56, %c0_34] : memref<72x256xf32, #tpu.memory_space<vmem>>, vector<8x256xf32>
    tpu.vector_store %arg4[%c56, %c0_34], %77 {strides = array<i32>} : memref<72x256xf32, #tpu.memory_space<vmem>>, vector<8x256xf32>,
    %c239_i32 = arith.constant 239 : i32
    %79 = tpu.dynamic_rotate %5 by %c239_i32 dim 1 : vector<8x256xf32>, i32 -> vector<8x256xf32>
    %c15_i32_35 = arith.constant 15 : i32
    %80 = vector.broadcast %c15_i32_35 : i32 to vector<1x256xi32>
    %81 = arith.cmpi slt, %10, %80 : vector<1x256xi32>
    %c15_i32_36 = arith.constant 15 : i32
    %82 = vector.broadcast %c15_i32_36 : i32 to vector<1x256xi32>
    %83 = arith.cmpi slt, %12, %82 : vector<1x256xi32>
    %84 = arith.andi %81, %83 : vector<1x256xi1>
    %cst_37 = arith.constant 0.000000e+00 : f32
    %85 = vector.shape_cast %84 : vector<1x256xi1> to vector<1x256xi1>
    %86 = vector.broadcast %85 : vector<1x256xi1> to vector<8x256xi1>
    %87 = vector.broadcast %cst_37 : f32 to vector<8x256xf32>
    %88 = arith.select %86, %79, %87 : vector<8x256xi1>, vector<8x256xf32>
    %c64 = arith.constant 64 : index
    %c0_38 = arith.constant 0 : index
    %89 = vector.load %arg4[%c64, %c0_38] : memref<72x256xf32, #tpu.memory_space<vmem>>, vector<8x256xf32>
    tpu.vector_store %arg4[%c64, %c0_38], %88 {strides = array<i32>} : memref<72x256xf32, #tpu.memory_space<vmem>>, vector<8x256xf32>,
    %c0_39 = arith.constant 0 : index
    %c0_40 = arith.constant 0 : index
    %90 = vector.load %arg2[%c0_39, %c0_40] : memref<4x72xf32, #tpu.memory_space<vmem>>, vector<4x72xf32>
    %c0_41 = arith.constant 0 : index
    %c0_42 = arith.constant 0 : index
    %91 = vector.load %arg4[%c0_41, %c0_42] : memref<72x256xf32, #tpu.memory_space<vmem>>, vector<72x256xf32>
    %cst_43 = arith.constant dense<0.000000e+00> : vector<4x256xf32>
    %92 = tpu.matmul %90, %91, %cst_43 {dimension_numbers = #tpu.dot_dimension_numbers<[1], [0], [0], [1], [0, 0, 1, 1], [], []>, precision = #tpu.contract_precision<fp32>} : vector<4x72xf32>, vector<72x256xf32>, vector<4x256xf32> -> vector<4x256xf32>
    %cst_44 = arith.constant dense<0.000000e+00> : vector<4xf32>
    %93 = vector.multi_reduction <add>, %92, %cst_44 [1] : vector<4x256xf32> to vector<4xf32>
    %94 = vector.shape_cast %93 : vector<4xf32> to vector<4x1xf32>
    %cst_45 = arith.constant 2.560000e+02 : f32
    %95 = vector.broadcast %cst_45 : f32 to vector<4x1xf32>
    %96 = arith.divf %94, %95 : vector<4x1xf32>
    %97 = vector.broadcast %96 : vector<4x1xf32> to vector<4x256xf32>
    %98 = arith.subf %92, %97 : vector<4x256xf32>
    %99 = arith.mulf %98, %98 : vector<4x256xf32>
    %cst_46 = arith.constant dense<0.000000e+00> : vector<4xf32>
    %100 = vector.multi_reduction <add>, %99, %cst_46 [1] : vector<4x256xf32> to vector<4xf32>
    %101 = vector.shape_cast %100 : vector<4xf32> to vector<4x1xf32>
    %cst_47 = arith.constant 2.560000e+02 : f32
    %102 = vector.broadcast %cst_47 : f32 to vector<4x1xf32>
    %103 = arith.divf %101, %102 : vector<4x1xf32>
    %cst_48 = arith.constant 9.99999974E-6 : f32
    %104 = vector.broadcast %cst_48 : f32 to vector<4x1xf32>
    %105 = arith.addf %103, %104 : vector<4x1xf32>
    %106 = math.rsqrt %105 : vector<4x1xf32>
    %107 = vector.broadcast %106 : vector<4x1xf32> to vector<4x256xf32>
    %108 = arith.mulf %98, %107 : vector<4x256xf32>
    %cst_49 = arith.constant 0.000000e+00 : f32
    %109 = vector.broadcast %cst_49 : f32 to vector<4x256xf32>
    %110 = arith.maximumf %108, %109 : vector<4x256xf32>
    %111 = vector.extract_strided_slice %5 {offsets = [0, 0], sizes = [4, 256], strides = [1, 1]} : vector<8x256xf32> to vector<4x256xf32>
    %112 = arith.addf %111, %110 : vector<4x256xf32>
    %c0_50 = arith.constant 0 : index
    %c0_51 = arith.constant 0 : index
    %c0_52 = arith.constant 0 : index
    %113 = vector.load %arg3[%c0_50, %c0_51, %c0_52] : memref<1x4x256xf32, #tpu.memory_space<vmem>>, vector<1x4x256xf32>
    %114 = vector.shape_cast %113 : vector<1x4x256xf32> to vector<4x256xf32>
    %115 = vector.shape_cast %112 : vector<4x256xf32> to vector<1x4x256xf32>
    tpu.vector_store %arg3[%c0_50, %c0_51, %c0_52], %115 {strides = array<i32>} : memref<1x4x256xf32, #tpu.memory_space<vmem>>, vector<1x4x256xf32>,
    return
  }
  func.func @transform_0(%arg0: i32) -> (i32, i32, i32) {
    %c0_i32 = arith.constant 0 : i32
    %c0_i32_0 = arith.constant 0 : i32
    %c0_i32_1 = arith.constant 0 : i32
    return %arg0, %c0_i32, %c0_i32_0 : i32, i32, i32
  }
  func.func @transform_1(%arg0: i32) -> (i32, i32) {
    %c0_i32 = arith.constant 0 : i32
    %c0_i32_0 = arith.constant 0 : i32
    %c0_i32_1 = arith.constant 0 : i32
    return %c0_i32, %c0_i32_0 : i32, i32
  }
  func.func @transform_2(%arg0: i32) -> (i32, i32, i32) {
    %c0_i32 = arith.constant 0 : i32
    %c0_i32_0 = arith.constant 0 : i32
    %c0_i32_1 = arith.constant 0 : i32
    return %arg0, %c0_i32, %c0_i32_0 : i32, i32, i32
  }
}

</mosaic_0001>

<llo_original>
// kernel: tpu_custom_call.1
$region0: #{tpu_custom_call.1}
  #allocation0 [shape = 'u32[]', space=smem, size = 0x4, offset = 0x4, fixed_abs, tag = 'smem constant byte address 0x4 - core index']
  #allocation1 [shape = 'u32[144,128]{1,0:T(1,128)}', space=vmem, size = 0x12000, scoped, tag = 'internal scratch']
  #allocation2 [shape = 'f32[72,256]{1,0:T(8,128)}', space=vmem, size = 0x12000, scoped, tag = 'scratch operand']
  #allocation3 [shape = 'f32[8,256]{1,0:T(8,128)}', space=vmem, size = 0x2000, scoped, tag = 'scratch operand']
  %s0 = inlined_call_operand.hbm [shape: f32[2,4,256], index: 0, kind: input, shape index: {}]
  %s1 = inlined_call_operand.hbm [shape: f32[4,72], index: 1, kind: input, shape index: {}]
  %s2 = inlined_call_operand.hbm [shape: f32[2,4,256], index: 2, kind: output, shape index: {}]
  %s3 = sld [smem:[#allocation0]]
  $region49: #{tpu_custom_call.1} parent=0
    _
  %s5 = ssub.s32 1, %s3
  %s6 = scalar_select 0, %s5, %s3
  $region1: #{tpu_custom_call.1} parent=0
    #allocation4 [shape = 'u8[8192]{0}', space=vmem, size = 0x2000, scoped, tag = 'input window, operand 0']
    #allocation5 [shape = 's32[2]{0}', space=sflag, size = 0x8, scoped, tag = 'scoped memory for tpu_custom_call.1']
    #allocation6 [shape = 's32[2]{0}', space=sflag, size = 0x8, scoped, tag = 'scoped memory for tpu_custom_call.1']
    #allocation7 [shape = 'u8[2048]{0}', space=vmem, size = 0x800, scoped, tag = 'input window, operand 1, single buffered']
    #allocation8 [shape = 's32[1]{0}', space=sflag, size = 0x4, scoped, tag = 'scoped memory for tpu_custom_call.1']
    #allocation9 [shape = 'u8[8192]{0}', space=vmem, size = 0x2000, scoped, tag = 'output window, operand 0']
    %7 = vsyncpa [#allocation5], 0
    %s8 = scalar_lea.sflag [#allocation5], 1
    %9 = vsyncpa %s8, 0
    %10 = vsyncpa [#allocation8], 0
    %11 = vsyncpa [#allocation6], 0
    %s12 = scalar_lea.sflag [#allocation6], 1
    %13 = vsyncpa %s12, 0
    loop: start=0, step=1, limit=4
    $region2: #{tpu_custom_call.1} parent=1 // loop_pre_header
      _
    $region3: #{tpu_custom_call.1} parent=1 // loop_header
      %s15 = sphi 0, %s19
      %p16 = scmp.ge.s32.totalorder %s15, 4
      %s25 = sphi 0, %s27
      %s28 = sphi 0, %s25
      %s29 = sphi 0, %s28
      %s45 = sphi 0, %s29
      %s49 = sphi 0, %s49
      %s51 = sphi 0, %s49
      %s52 = sphi 0, %s51
      %s66 = sphi 0, %s52
      %s72 = sphi 0, %s74
      %s75 = sphi 0, %s72
      %s76 = sphi 0, %s75
      %s92 = sphi 0, %s76
    $region4: #{tpu_custom_call.1} parent=1 // loop_header_branch
      %18 = sbr.rel (%p16) target = $region8
    $region5: #{tpu_custom_call.1} parent=1 // loop_body
      %s20 = ssub.s32 %s15, 1
      %s21 = ssub.s32 %s15, 2
      %s22 = sadd.s32 %s15, 1
      %s23 = ssub.s32 %s15, %s22
      %p24 = scmp.eq.s32.totalorder %s23, 0
      %s26 = sadd.s32 %s25, 1
      %s27 = scalar_select %p24, %s25, %s26
      %p30 = pneg %p24
      %p31 = scmp.eq.s32.totalorder %s15, 1
      %p32 = por %p30, %p31
      %p33 = scmp.ne.s32.totalorder %s25, %s28
      %p34 = scmp.eq.s32.totalorder %s15, 0
      %p35 = por %p33, %p34
      %p36 = scmp.ne.s32.totalorder %s25, %s28
      %p37 = scmp.eq.s32.totalorder %s20, 1
      %p38 = por %p36, %p37
      %p39 = scmp.ne.s32.totalorder %s28, %s29
      %p40 = scmp.eq.s32.totalorder %s20, 0
      %p41 = por %p39, %p40
      %p42 = scmp.ne.s32.totalorder %s28, %s29
      %p43 = scmp.eq.s32.totalorder %s21, 1
      %p44 = por %p42, %p43
      %p46 = scmp.ne.s32.totalorder %s29, %s45
      %p47 = scmp.eq.s32.totalorder %s21, 0
      %p48 = por %p46, %p47
      %s50 = sadd.s32 %s49, 1
      %p53 = scmp.eq.s32.totalorder %s15, 1
      %p54 = scmp.ne.s32.totalorder %s49, %s51
      %p55 = scmp.eq.s32.totalorder %s15, 0
      %p56 = por %p54, %p55
      %p57 = scmp.ne.s32.totalorder %s49, %s51
      %p58 = scmp.eq.s32.totalorder %s20, 1
      %p59 = por %p57, %p58
      %p60 = scmp.ne.s32.totalorder %s51, %s52
      %p61 = scmp.eq.s32.totalorder %s20, 0
      %p62 = por %p60, %p61
      %p63 = scmp.ne.s32.totalorder %s51, %s52
      %p64 = scmp.eq.s32.totalorder %s21, 1
      %p65 = por %p63, %p64
      %p67 = scmp.ne.s32.totalorder %s52, %s66
      %p68 = scmp.eq.s32.totalorder %s21, 0
      %p69 = por %p67, %p68
      %s70 = ssub.s32 %s15, %s22
      %p71 = scmp.eq.s32.totalorder %s70, 0
      %s73 = sadd.s32 %s72, 1
      %s74 = scalar_select %p71, %s72, %s73
      %p77 = pneg %p71
      %p78 = scmp.eq.s32.totalorder %s15, 1
      %p79 = por %p77, %p78
      %p80 = scmp.ne.s32.totalorder %s72, %s75
      %p81 = scmp.eq.s32.totalorder %s15, 0
      %p82 = por %p80, %p81
      %p83 = scmp.ne.s32.totalorder %s72, %s75
      %p84 = scmp.eq.s32.totalorder %s20, 1
      %p85 = por %p83, %p84
      %p86 = scmp.ne.s32.totalorder %s75, %s76
      %p87 = scmp.eq.s32.totalorder %s20, 0
      %p88 = por %p86, %p87
      %p89 = scmp.ne.s32.totalorder %s75, %s76
      %p90 = scmp.eq.s32.totalorder %s21, 1
      %p91 = por %p89, %p90
      %p93 = scmp.ne.s32.totalorder %s76, %s92
      %p94 = scmp.eq.s32.totalorder %s21, 0
      %p95 = por %p93, %p94
      %p96 = scmp.le.s32.totalorder 1, %s15
      %p97 = scmp.lt.s32.totalorder %s15, 3
      %p98 = pnand %p96, %p97
      %p99 = pneg %p98
      // Predicated region
      $region9: #{tpu_custom_call.1} parent=5 // pred_check
        _
      $region10: #{tpu_custom_call.1} parent=5 // pred_check_branch
        %101 = sbr.rel (%p98) target = $region12
      $region11: #{tpu_custom_call.1} parent=5 // pred_region
        %s102 = ssub.s32 %s15, 1
        // Predicated region
        $region13: #{tpu_custom_call.1} parent=11 // pred_check
          %p103 = pneg %p62
        $region14: #{tpu_custom_call.1} parent=11 // pred_check_branch
          %105 = sbr.rel (%p103) target = $region16
        $region15: #{tpu_custom_call.1} parent=11 // pred_region
          %s107 = ssub.s32 64, 64
          %108 = vsyncadd [#allocation8], %s107
          %s110 = sshll.u32 [#allocation7], 4
          %s111 = int_to_ptr.vmem [resolvable:$true] %s110
          %113 = dma.hbm_to_vmem [thread:$0]  %s1, 64, %s111, [#allocation8]
        $region16: #{tpu_custom_call.1} parent=11 // pred_fallthru
          _
      $region12: #{tpu_custom_call.1} parent=5 // pred_fallthru
        _
      %p114 = scmp.lt.s32.totalorder %s15, 2
      // Predicated region
      $region17: #{tpu_custom_call.1} parent=5 // pred_check
        %p115 = pneg %p114
      $region18: #{tpu_custom_call.1} parent=5 // pred_check_branch
        %117 = sbr.rel (%p115) target = $region20
      $region19: #{tpu_custom_call.1} parent=5 // pred_region
        // Predicated region
        $region21: #{tpu_custom_call.1} parent=19 // pred_check
          %p118 = pneg %p35
        $region22: #{tpu_custom_call.1} parent=19 // pred_check_branch
          %120 = sbr.rel (%p118) target = $region24
        $region23: #{tpu_custom_call.1} parent=19 // pred_region
          %s121 = sand.u32 %s25, 1
          %s122 = scalar_lea.sflag [#allocation5], %s121
          %s123 = sand.u32 %s25, 1
          %s124 = smul.addr %s123, 8
          %s125 = scalar_lea.vmem [#allocation4], %s124
          %s127 = ssub.s32 128, 128
          %128 = vsyncadd %s122, %s127
          %s129 = smul.addr %s15, 2
          %s130 = smul.addr %s129, 64
          %s131 = scalar_lea.hbm %s0, %s130
          %s133 = sshll.u32 %s125, 4
          %s134 = int_to_ptr.vmem [resolvable:$true] %s133
          %136 = dma.hbm_to_vmem [thread:$0]  %s131, 128, %s134, %s122
        $region24: #{tpu_custom_call.1} parent=19 // pred_fallthru
          _
      $region20: #{tpu_custom_call.1} parent=5 // pred_fallthru
        _
      %p137 = scmp.le.s32.totalorder 1, %s15
      %p138 = scmp.lt.s32.totalorder %s15, 3
      %p139 = pnand %p137, %p138
      %p140 = pneg %p139
      // Predicated region
      $region25: #{tpu_custom_call.1} parent=5 // pred_check
        _
      $region26: #{tpu_custom_call.1} parent=5 // pred_check_branch
        %142 = sbr.rel (%p139) target = $region28
      $region27: #{tpu_custom_call.1} parent=5 // pred_region
        %s143 = ssub.s32 %s15, 1
        %s144 = sand.u32 %s28, 1
        %s145 = scalar_lea.sflag [#allocation5], %s144
        %s146 = sand.u32 %s28, 1
        %s147 = smul.addr %s146, 8
        %s148 = scalar_lea.vmem [#allocation4], %s147
        // Predicated region
        $region29: #{tpu_custom_call.1} parent=27 // pred_check
          %p149 = pneg %p41
        $region30: #{tpu_custom_call.1} parent=27 // pred_check_branch
          %151 = sbr.rel (%p149) target = $region32
        $region31: #{tpu_custom_call.1} parent=27 // pred_region
          %152 = dma.done %s145, 128
        $region32: #{tpu_custom_call.1} parent=27 // pred_fallthru
          _
        // Predicated region
        $region33: #{tpu_custom_call.1} parent=27 // pred_check
          %p153 = pneg %p62
        $region34: #{tpu_custom_call.1} parent=27 // pred_check_branch
          %155 = sbr.rel (%p153) target = $region36
        $region35: #{tpu_custom_call.1} parent=27 // pred_region
          %156 = dma.done [#allocation8], 64
        $region36: #{tpu_custom_call.1} parent=27 // pred_fallthru
          _
        %s157 = sand.u32 %s28, 1
        %s158 = scalar_lea.sflag [#allocation5], %s157
        %s159 = sand.u32 %s28, 1
        %s160 = smul.addr %s159, 8
        %s161 = scalar_lea.vmem [#allocation4], %s160
        %p162 = pneg %p41
        %p163 = pneg %p38
        %p164 = pneg %p62
        %p165 = pneg %p59
        %p166 = pneg %p88
        %p167 = pneg %p85
        %s168 = sand.u32 %s75, 1
        %s169 = scalar_lea.sflag [#allocation6], %s168
        %s170 = sand.u32 %s75, 1
        %s171 = smul.addr %s170, 8
        %s172 = scalar_lea.vmem [#allocation9], %s171
        %173 = vst [vmem:[#allocation3] sm:$0xf0] 0.0
        %174 = vst [vmem:[#allocation3 + $0x8] sm:$0xf0] 0.0
        %v175 = vld [vmem:[%s148] sm:$0xff]
        %v177 = vcombine.high %v175, %v175
        %179 = vst [vmem:[#allocation3] sm:$0xf] %v175
        %180 = vst [vmem:[#allocation3 + $0x8] sm:$0xf] %v177
        %v181 = vld [vmem:[#allocation3] sm:$0xff]
        %v182 = vld [vmem:[#allocation3 + $0x8] sm:$0xff]
        %v183 = vlaneseq
        %v184 = vand.u32 %v183, 127
        %v185 = vadd.s32 %v184, 128
        %v186 = vand.u32 %v184, 255
        %v187 = vand.u32 %v185, 255
        %v188 = vshra.s32 %v186, 4
        %v189 = vshra.s32 %v187, 4
        %v190 = vand.u32 %v186, 15
        %v191 = vand.u32 %v187, 15
        %192 = vrot.lane.b32.xlu0 %v181, 17
        %v193 = vpop.permute.xlu0 %192
        %194 = vrot.lane.b32.xlu0 %v182, 17
        %v195 = vpop.permute.xlu0 %194
        %vm196 = vcmp.lt.s32.totalorder %v184, 17
        %v197 = vsel %vm196, %v193, %v195
        %v198 = vsel %vm196, %v195, %v193
        %vm199 = vcmp.ge.s32.totalorder %v188, 1
        %vm200 = vcmp.ge.s32.totalorder %v189, 1
        %vm201 = vcmp.ge.s32.totalorder %v190, 1
        %vm202 = vcmp.ge.s32.totalorder %v191, 1
        %vm203 = vmand %vm199, %vm201
        %vm204 = vmand %vm200, %vm202
        %v205 = vsel %vm203, 1, 0
        %v206 = vsel %vm204, 1, 0
        %vm207 = vcmp.eq.s32.totalorder %v205, 1
        %vm208 = vcmp.eq.s32.totalorder %v206, 1
        %v209 = vsel %vm207, %v198, 0.0
        %v210 = vsel %vm208, %v197, 0.0
        %211 = vst [vmem:[#allocation2] sm:$0xff] %v209
        %212 = vst [vmem:[#allocation2 + $0x8] sm:$0xff] %v210
        %213 = vrot.lane.b32.xlu0 %v181, 16
        %v214 = vpop.permute.xlu0 %213
        %215 = vrot.lane.b32.xlu0 %v182, 16
        %v216 = vpop.permute.xlu0 %215
        %vm217 = vcmp.lt.s32.totalorder %v184, 16
        %v218 = vsel %vm217, %v214, %v216
        %v219 = vsel %vm217, %v216, %v214
        %v220 = vsel %vm199, 1, 0
        %v221 = vsel %vm200, 1, 0
        %vm222 = vcmp.eq.s32.totalorder %v220, 1
        %vm223 = vcmp.eq.s32.totalorder %v221, 1
        %v224 = vsel %vm222, %v219, 0.0
        %v225 = vsel %vm223, %v218, 0.0
        %226 = vst [vmem:[#allocation2 + $0x10] sm:$0xff] %v224
        %227 = vst [vmem:[#allocation2 + $0x18] sm:$0xff] %v225
        %228 = vrot.lane.b32.xlu0 %v181, 15
        %v229 = vpop.permute.xlu0 %228
        %230 = vrot.lane.b32.xlu0 %v182, 15
        %v231 = vpop.permute.xlu0 %230
        %vm232 = vcmp.lt.s32.totalorder %v184, 15
        %v233 = vsel %vm232, %v229, %v231
        %v234 = vsel %vm232, %v231, %v229
        %vm235 = vcmp.lt.s32.totalorder %v190, 15
        %vm236 = vcmp.lt.s32.totalorder %v191, 15
        %vm237 = vmand %vm199, %vm235
        %vm238 = vmand %vm200, %vm236
        %v239 = vsel %vm237, 1, 0
        %v240 = vsel %vm238, 1, 0
        %vm241 = vcmp.eq.s32.totalorder %v239, 1
        %vm242 = vcmp.eq.s32.totalorder %v240, 1
        %v243 = vsel %vm241, %v234, 0.0
        %v244 = vsel %vm242, %v233, 0.0
        %245 = vst [vmem:[#allocation2 + $0x20] sm:$0xff] %v243
        %246 = vst [vmem:[#allocation2 + $0x28] sm:$0xff] %v244
        %247 = vrot.lane.b32.xlu0 %v181, 1
        %v248 = vpop.permute.xlu0 %247
        %249 = vrot.lane.b32.xlu0 %v182, 1
        %v250 = vpop.permute.xlu0 %249
        %vm251 = vcmp.lt.s32.totalorder %v184, 1
        %v252 = vsel %vm251, %v248, %v250
        %v253 = vsel %vm251, %v250, %v248
        %v254 = vsel %vm201, 1, 0
        %v255 = vsel %vm202, 1, 0
        %vm256 = vcmp.eq.s32.totalorder %v254, 1
        %vm257 = vcmp.eq.s32.totalorder %v255, 1
        %v258 = vsel %vm256, %v253, 0.0
        %v259 = vsel %vm257, %v252, 0.0
        %260 = vst [vmem:[#allocation2 + $0x30] sm:$0xff] %v258
        %261 = vst [vmem:[#allocation2 + $0x38] sm:$0xff] %v259
        %262 = vst [vmem:[#allocation2 + $0x40] sm:$0xff] %v181
        %263 = vst [vmem:[#allocation2 + $0x48] sm:$0xff] %v182
        %264 = vrot.lane.b32.xlu0 %v181, 127
        %v265 = vpop.permute.xlu0 %264
        %266 = vrot.lane.b32.xlu0 %v182, 127
        %v267 = vpop.permute.xlu0 %266
        %vm268 = vcmp.lt.s32.totalorder %v184, 127
        %v269 = vsel %vm268, %v265, %v267
        %v270 = vsel %vm268, %v267, %v265
        %v271 = vsel %vm235, 1, 0
        %v272 = vsel %vm236, 1, 0
        %vm273 = vcmp.eq.s32.totalorder %v271, 1
        %vm274 = vcmp.eq.s32.totalorder %v272, 1
        %v275 = vsel %vm273, %v269, 0.0
        %v276 = vsel %vm274, %v270, 0.0
        %277 = vst [vmem:[#allocation2 + $0x50] sm:$0xff] %v275
        %278 = vst [vmem:[#allocation2 + $0x58] sm:$0xff] %v276
        %279 = vrot.lane.b32.xlu0 %v181, 113
        %v280 = vpop.permute.xlu0 %279
        %281 = vrot.lane.b32.xlu0 %v182, 113
        %v282 = vpop.permute.xlu0 %281
        %vm283 = vcmp.lt.s32.totalorder %v184, 113
        %v284 = vsel %vm283, %v280, %v282
        %v285 = vsel %vm283, %v282, %v280
        %vm286 = vcmp.lt.s32.totalorder %v188, 15
        %vm287 = vcmp.lt.s32.totalorder %v189, 15
        %vm288 = vmand %vm286, %vm201
        %vm289 = vmand %vm287, %vm202
        %v290 = vsel %vm288, 1, 0
        %v291 = vsel %vm289, 1, 0
        %vm292 = vcmp.eq.s32.totalorder %v290, 1
        %vm293 = vcmp.eq.s32.totalorder %v291, 1
        %v294 = vsel %vm292, %v284, 0.0
        %v295 = vsel %vm293, %v285, 0.0
        %296 = vst [vmem:[#allocation2 + $0x60] sm:$0xff] %v294
        %297 = vst [vmem:[#allocation2 + $0x68] sm:$0xff] %v295
        %298 = vrot.lane.b32.xlu0 %v181, 112
        %v299 = vpop.permute.xlu0 %298
        %300 = vrot.lane.b32.xlu0 %v182, 112
        %v301 = vpop.permute.xlu0 %300
        %vm302 = vcmp.lt.s32.totalorder %v184, 112
        %v303 = vsel %vm302, %v299, %v301
        %v304 = vsel %vm302, %v301, %v299
        %v305 = vsel %vm286, 1, 0
        %v306 = vsel %vm287, 1, 0
        %vm307 = vcmp.eq.s32.totalorder %v305, 1
        %vm308 = vcmp.eq.s32.totalorder %v306, 1
        %v309 = vsel %vm307, %v303, 0.0
        %v310 = vsel %vm308, %v304, 0.0
        %311 = vst [vmem:[#allocation2 + $0x70] sm:$0xff] %v309
        %312 = vst [vmem:[#allocation2 + $0x78] sm:$0xff] %v310
        %313 = vrot.lane.b32.xlu0 %v181, 111
        %v314 = vpop.permute.xlu0 %313
        %315 = vrot.lane.b32.xlu0 %v182, 111
        %v316 = vpop.permute.xlu0 %315
        %vm317 = vcmp.lt.s32.totalorder %v184, 111
        %v318 = vsel %vm317, %v314, %v316
        %v319 = vsel %vm317, %v316, %v314
        %vm320 = vmand %vm286, %vm235
        %vm321 = vmand %vm287, %vm236
        %v322 = vsel %vm320, 1, 0
        %v323 = vsel %vm321, 1, 0
        %vm324 = vcmp.eq.s32.totalorder %v322, 1
        %vm325 = vcmp.eq.s32.totalorder %v323, 1
        %v326 = vsel %vm324, %v318, 0.0
        %v327 = vsel %vm325, %v319, 0.0
        %328 = vst [vmem:[#allocation2 + $0x80] sm:$0xff] %v326
        %329 = vst [vmem:[#allocation2 + $0x88] sm:$0xff] %v327
        %v330 = vld [vmem:[#allocation7] sm:$0xf]
        %v331 = vld [vmem:[#allocation2] sm:$0xff]
        %v332 = vld [vmem:[#allocation2 + $0x8] sm:$0xff]
        %v333 = vld [vmem:[#allocation2 + $0x10] sm:$0xff]
        %v334 = vld [vmem:[#allocation2 + $0x18] sm:$0xff]
        %v335 = vld [vmem:[#allocation2 + $0x20] sm:$0xff]
        %v336 = vld [vmem:[#allocation2 + $0x28] sm:$0xff]
        %v337 = vld [vmem:[#allocation2 + $0x30] sm:$0xff]
        %v338 = vld [vmem:[#allocation2 + $0x38] sm:$0xff]
        %v339 = vld [vmem:[#allocation2 + $0x40] sm:$0xff]
        %v340 = vld [vmem:[#allocation2 + $0x48] sm:$0xff]
        %v341 = vld [vmem:[#allocation2 + $0x50] sm:$0xff]
        %v342 = vld [vmem:[#allocation2 + $0x58] sm:$0xff]
        %v343 = vld [vmem:[#allocation2 + $0x60] sm:$0xff]
        %v344 = vld [vmem:[#allocation2 + $0x68] sm:$0xff]
        %v345 = vld [vmem:[#allocation2 + $0x70] sm:$0xff]
        %v346 = vld [vmem:[#allocation2 + $0x78] sm:$0xff]
        %v347 = vld [vmem:[#allocation2 + $0x80] sm:$0xff]
        %v348 = vld [vmem:[#allocation2 + $0x88] sm:$0xff]
        %vm349 = vcmask 588800
        %v351 = vsel %vm349, %v330, 0
        %v353 = vand.u32 %v332, 4294901760
        %354 = vmatprep.subr.mxu0 %v353
        %v355 = vand.u32 %v331, 4294901760
        %356 = vmatpush1.msra.mxu0 %v355
        %v357 = vand.u32 %v334, 4294901760
        %358 = vmatprep.subr.mxu0 %v357
        %v359 = vand.u32 %v333, 4294901760
        %360 = vmatpush1.msra.mxu0 %v359
        %v361 = vand.u32 %v336, 4294901760
        %362 = vmatprep.subr.mxu0 %v361
        %v363 = vand.u32 %v335, 4294901760
        %364 = vmatpush1.msra.mxu0 %v363
        %v365 = vand.u32 %v338, 4294901760
        %366 = vmatprep.subr.mxu0 %v365
        %v367 = vand.u32 %v337, 4294901760
        %368 = vmatpush1.msra.mxu0 %v367
        %v369 = vand.u32 %v340, 4294901760
        %370 = vmatprep.subr.mxu0 %v369
        %v371 = vand.u32 %v339, 4294901760
        %372 = vmatpush1.msra.mxu0 %v371
        %v373 = vand.u32 %v342, 4294901760
        %374 = vmatprep.subr.mxu0 %v373
        %v375 = vand.u32 %v341, 4294901760
        %376 = vmatpush1.msra.mxu0 %v375
        %v377 = vand.u32 %v344, 4294901760
        %378 = vmatprep.subr.mxu0 %v377
        %v379 = vand.u32 %v343, 4294901760
        %380 = vmatpush1.msra.mxu0 %v379
        %v381 = vand.u32 %v346, 4294901760
        %382 = vmatprep.subr.mxu0 %v381
        %v383 = vand.u32 %v345, 4294901760
        %384 = vmatpush1.msra.mxu0 %v383
        %v385 = vand.u32 %v348, 4294901760
        %386 = vmatprep.subr.mxu0 %v385
        %v387 = vand.u32 %v347, 4294901760
        %388 = vmatpush1.msra.mxu0 %v387
        %389 = vmatprep.subr.mxu0 0.0
        %390 = vmatpush1.msra.mxu0 0.0
        %391 = vmatprep.subr.mxu0 0.0
        %392 = vmatpush1.msra.mxu0 0.0
        %393 = vmatprep.subr.mxu0 0.0
        %394 = vmatpush1.msra.mxu0 0.0
        %395 = vmatprep.subr.mxu0 0.0
        %396 = vmatpush1.msra.mxu0 0.0
        %397 = vmatprep.subr.mxu0 0.0
        %398 = vmatpush1.msra.mxu0 0.0
        %399 = vmatprep.subr.mxu0 0.0
        %400 = vmatpush1.msra.mxu0 0.0
        %401 = vmatprep.subr.mxu0 0.0
        %402 = vmatpush1.msra.mxu0 0.0
        %403 = vmatprep.subr.mxu0 0.0
        %404 = vmatpush1.msra.mxu0 0.0
        %405 = vmatprep.subr.mxu0 0.0
        %406 = vmatpush1.msra.mxu0 0.0
        %407 = vmatprep.subr.mxu0 0.0
        %408 = vmatpush1.msra.mxu0 0.0
        %409 = vmatprep.subr.mxu0 0.0
        %410 = vmatpush1.msra.mxu0 0.0
        %411 = vmatprep.subr.mxu0 0.0
        %412 = vmatpush1.msra.mxu0 0.0
        %413 = vmatprep.subr.mxu0 0.0
        %414 = vmatpush1.msra.mxu0 0.0
        %415 = vmatprep.subr.mxu0 0.0
        %416 = vmatpush1.msra.mxu0 0.0
        %417 = vmatprep.subr.mxu0 0.0
        %418 = vmatpush1.msra.mxu0 0.0
        %419 = vmatprep.subr.mxu0 0.0
        %420 = vmatpush1.msra.mxu0 0.0
        %421 = vmatprep.subr.mxu0 0.0
        %422 = vmatpush1.msra.mxu0 0.0
        %423 = vmatprep.subr.mxu0 0.0
        %424 = vmatpush1.msra.mxu0 0.0
        %425 = vmatprep.subr.mxu0 0.0
        %426 = vmatpush1.msra.mxu0 0.0
        %427 = vmatprep.subr.mxu0 0.0
        %428 = vmatpush1.msra.mxu0 0.0
        %429 = vmatprep.subr.mxu0 0.0
        %430 = vmatpush1.msra.mxu0 0.0
        %431 = vmatprep.subr.mxu0 0.0
        %432 = vmatpush1.msra.mxu0 0.0
        %433 = vmatprep.subr.mxu0 0.0
        %434 = vmatpush1.msra.mxu0 0.0
        %435 = vmatprep.mubr.f32.mxu0 0.0
        %v436 = vand.u32 %v351, 4294901760
        %v437 = vsub.f32 %v351, %v436
        %v438 = vand.u32 %v437, 4294901760
        %v439 = vsub.f32 %v437, %v438
        %v440 = vand.u32 %v439, 4294901760
        %441 = vmatmul.mubr.f32.gmra.mrb[0].mxu0 %v440
        %v442 = vpop.f32.mrb[0].mxu0
        %v443 = vadd.f32 0.0, %v442
        %v444 = vpop.f32.mrb[0].mxu0
        %v445 = vadd.f32 0.0, %v444
        %446 = vdwg.mxu0
        %v447 = vand.u32 %v332, 4294901760
        %v448 = vsub.f32 %v332, %v447
        %v449 = vand.u32 %v448, 4294901760
        %v450 = vsub.f32 %v448, %v449
        %v451 = vand.u32 %v450, 4294901760
        %452 = vmatprep.subr.mxu0 %v451
        %v453 = vand.u32 %v331, 4294901760
        %v454 = vsub.f32 %v331, %v453
        %v455 = vand.u32 %v454, 4294901760
        %v456 = vsub.f32 %v454, %v455
        %v457 = vand.u32 %v456, 4294901760
        %458 = vmatpush1.msra.mxu0 %v457
        %v459 = vand.u32 %v334, 4294901760
        %v460 = vsub.f32 %v334, %v459
        %v461 = vand.u32 %v460, 4294901760
        %v462 = vsub.f32 %v460, %v461
        %v463 = vand.u32 %v462, 4294901760
        %464 = vmatprep.subr.mxu0 %v463
        %v465 = vand.u32 %v333, 4294901760
        %v466 = vsub.f32 %v333, %v465
        %v467 = vand.u32 %v466, 4294901760
        %v468 = vsub.f32 %v466, %v467
        %v469 = vand.u32 %v468, 4294901760
        %470 = vmatpush1.msra.mxu0 %v469
        %v471 = vand.u32 %v336, 4294901760
        %v472 = vsub.f32 %v336, %v471
        %v473 = vand.u32 %v472, 4294901760
        %v474 = vsub.f32 %v472, %v473
        %v475 = vand.u32 %v474, 4294901760
        %476 = vmatprep.subr.mxu0 %v475
        %v477 = vand.u32 %v335, 4294901760
        %v478 = vsub.f32 %v335, %v477
        %v479 = vand.u32 %v478, 4294901760
        %v480 = vsub.f32 %v478, %v479
        %v481 = vand.u32 %v480, 4294901760
        %482 = vmatpush1.msra.mxu0 %v481
        %v483 = vand.u32 %v338, 4294901760
        %v484 = vsub.f32 %v338, %v483
        %v485 = vand.u32 %v484, 4294901760
        %v486 = vsub.f32 %v484, %v485
        %v487 = vand.u32 %v486, 4294901760
        %488 = vmatprep.subr.mxu0 %v487
        %v489 = vand.u32 %v337, 4294901760
        %v490 = vsub.f32 %v337, %v489
        %v491 = vand.u32 %v490, 4294901760
        %v492 = vsub.f32 %v490, %v491
        %v493 = vand.u32 %v492, 4294901760
        %494 = vmatpush1.msra.mxu0 %v493
        %v495 = vand.u32 %v340, 4294901760
        %v496 = vsub.f32 %v340, %v495
        %v497 = vand.u32 %v496, 4294901760
        %v498 = vsub.f32 %v496, %v497
        %v499 = vand.u32 %v498, 4294901760
        %500 = vmatprep.subr.mxu0 %v499
        %v501 = vand.u32 %v339, 4294901760
        %v502 = vsub.f32 %v339, %v501
        %v503 = vand.u32 %v502, 4294901760
        %v504 = vsub.f32 %v502, %v503
        %v505 = vand.u32 %v504, 4294901760
        %506 = vmatpush1.msra.mxu0 %v505
        %v507 = vand.u32 %v342, 4294901760
        %v508 = vsub.f32 %v342, %v507
        %v509 = vand.u32 %v508, 4294901760
        %v510 = vsub.f32 %v508, %v509
        %v511 = vand.u32 %v510, 4294901760
        %512 = vmatprep.subr.mxu0 %v511
        %v513 = vand.u32 %v341, 4294901760
        %v514 = vsub.f32 %v341, %v513
        %v515 = vand.u32 %v514, 4294901760
        %v516 = vsub.f32 %v514, %v515
        %v517 = vand.u32 %v516, 4294901760
        %518 = vmatpush1.msra.mxu0 %v517
        %v519 = vand.u32 %v344, 4294901760
        %v520 = vsub.f32 %v344, %v519
        %v521 = vand.u32 %v520, 4294901760
        %v522 = vsub.f32 %v520, %v521
        %v523 = vand.u32 %v522, 4294901760
        %524 = vmatprep.subr.mxu0 %v523
        %v525 = vand.u32 %v343, 4294901760
        %v526 = vsub.f32 %v343, %v525
        %v527 = vand.u32 %v526, 4294901760
        %v528 = vsub.f32 %v526, %v527
        %v529 = vand.u32 %v528, 4294901760
        %530 = vmatpush1.msra.mxu0 %v529
        %v531 = vand.u32 %v346, 4294901760
        %v532 = vsub.f32 %v346, %v531
        %v533 = vand.u32 %v532, 4294901760
        %v534 = vsub.f32 %v532, %v533
        %v535 = vand.u32 %v534, 4294901760
        %536 = vmatprep.subr.mxu0 %v535
        %v537 = vand.u32 %v345, 4294901760
        %v538 = vsub.f32 %v345, %v537
        %v539 = vand.u32 %v538, 4294901760
        %v540 = vsub.f32 %v538, %v539
        %v541 = vand.u32 %v540, 4294901760
        %542 = vmatpush1.msra.mxu0 %v541
        %v543 = vand.u32 %v348, 4294901760
        %v544 = vsub.f32 %v348, %v543
        %v545 = vand.u32 %v544, 4294901760
        %v546 = vsub.f32 %v544, %v545
        %v547 = vand.u32 %v546, 4294901760
        %548 = vmatprep.subr.mxu0 %v547
        %v549 = vand.u32 %v347, 4294901760
        %v550 = vsub.f32 %v347, %v549
        %v551 = vand.u32 %v550, 4294901760
        %v552 = vsub.f32 %v550, %v551
        %v553 = vand.u32 %v552, 4294901760
        %554 = vmatpush1.msra.mxu0 %v553
        %555 = vmatprep.subr.mxu0 0.0
        %556 = vmatpush1.msra.mxu0 0.0
        %557 = vmatprep.subr.mxu0 0.0
        %558 = vmatpush1.msra.mxu0 0.0
        %559 = vmatprep.subr.mxu0 0.0
        %560 = vmatpush1.msra.mxu0 0.0
        %561 = vmatprep.subr.mxu0 0.0
        %562 = vmatpush1.msra.mxu0 0.0
        %563 = vmatprep.subr.mxu0 0.0
        %564 = vmatpush1.msra.mxu0 0.0
        %565 = vmatprep.subr.mxu0 0.0
        %566 = vmatpush1.msra.mxu0 0.0
        %567 = vmatprep.subr.mxu0 0.0
        %568 = vmatpush1.msra.mxu0 0.0
        %569 = vmatprep.subr.mxu0 0.0
        %570 = vmatpush1.msra.mxu0 0.0
        %571 = vmatprep.subr.mxu0 0.0
        %572 = vmatpush1.msra.mxu0 0.0
        %573 = vmatprep.subr.mxu0 0.0
        %574 = vmatpush1.msra.mxu0 0.0
        %575 = vmatprep.subr.mxu0 0.0
        %576 = vmatpush1.msra.mxu0 0.0
        %577 = vmatprep.subr.mxu0 0.0
        %578 = vmatpush1.msra.mxu0 0.0
        %579 = vmatprep.subr.mxu0 0.0
        %580 = vmatpush1.msra.mxu0 0.0
        %581 = vmatprep.subr.mxu0 0.0
        %582 = vmatpush1.msra.mxu0 0.0
        %583 = vmatprep.subr.mxu0 0.0
        %584 = vmatpush1.msra.mxu0 0.0
        %585 = vmatprep.subr.mxu0 0.0
        %586 = vmatpush1.msra.mxu0 0.0
        %587 = vmatprep.subr.mxu0 0.0
        %588 = vmatpush1.msra.mxu0 0.0
        %589 = vmatprep.subr.mxu0 0.0
        %590 = vmatpush1.msra.mxu0 0.0
        %591 = vmatprep.subr.mxu0 0.0
        %592 = vmatpush1.msra.mxu0 0.0
        %593 = vmatprep.subr.mxu0 0.0
        %594 = vmatpush1.msra.mxu0 0.0
        %595 = vmatprep.subr.mxu0 0.0
        %596 = vmatpush1.msra.mxu0 0.0
        %597 = vmatprep.subr.mxu0 0.0
        %598 = vmatpush1.msra.mxu0 0.0
        %599 = vmatprep.subr.mxu0 0.0
        %600 = vmatpush1.msra.mxu0 0.0
        %601 = vmatprep.mubr.f32.mxu0 0.0
        %v602 = vand.u32 %v351, 4294901760
        %603 = vmatmul.mubr.f32.gmra.mrb[0].mxu0 %v602
        %v604 = vpop.f32.mrb[0].mxu0
        %v605 = vadd.f32 %v443, %v604
        %v606 = vpop.f32.mrb[0].mxu0
        %v607 = vadd.f32 %v445, %v606
        %608 = vdwg.mxu0
        %v609 = vand.u32 %v332, 4294901760
        %v610 = vsub.f32 %v332, %v609
        %611 = vmatprep.subr.mxu0 %v610
        %v612 = vand.u32 %v331, 4294901760
        %v613 = vsub.f32 %v331, %v612
        %614 = vmatpush1.msra.mxu0 %v613
        %v615 = vand.u32 %v334, 4294901760
        %v616 = vsub.f32 %v334, %v615
        %617 = vmatprep.subr.mxu0 %v616
        %v618 = vand.u32 %v333, 4294901760
        %v619 = vsub.f32 %v333, %v618
        %620 = vmatpush1.msra.mxu0 %v619
        %v621 = vand.u32 %v336, 4294901760
        %v622 = vsub.f32 %v336, %v621
        %623 = vmatprep.subr.mxu0 %v622
        %v624 = vand.u32 %v335, 4294901760
        %v625 = vsub.f32 %v335, %v624
        %626 = vmatpush1.msra.mxu0 %v625
        %v627 = vand.u32 %v338, 4294901760
        %v628 = vsub.f32 %v338, %v627
        %629 = vmatprep.subr.mxu0 %v628
        %v630 = vand.u32 %v337, 4294901760
        %v631 = vsub.f32 %v337, %v630
        %632 = vmatpush1.msra.mxu0 %v631
        %v633 = vand.u32 %v340, 4294901760
        %v634 = vsub.f32 %v340, %v633
        %635 = vmatprep.subr.mxu0 %v634
        %v636 = vand.u32 %v339, 4294901760
        %v637 = vsub.f32 %v339, %v636
        %638 = vmatpush1.msra.mxu0 %v637
        %v639 = vand.u32 %v342, 4294901760
        %v640 = vsub.f32 %v342, %v639
        %641 = vmatprep.subr.mxu0 %v640
        %v642 = vand.u32 %v341, 4294901760
        %v643 = vsub.f32 %v341, %v642
        %644 = vmatpush1.msra.mxu0 %v643
        %v645 = vand.u32 %v344, 4294901760
        %v646 = vsub.f32 %v344, %v645
        %647 = vmatprep.subr.mxu0 %v646
        %v648 = vand.u32 %v343, 4294901760
        %v649 = vsub.f32 %v343, %v648
        %650 = vmatpush1.msra.mxu0 %v649
        %v651 = vand.u32 %v346, 4294901760
        %v652 = vsub.f32 %v346, %v651
        %653 = vmatprep.subr.mxu0 %v652
        %v654 = vand.u32 %v345, 4294901760
        %v655 = vsub.f32 %v345, %v654
        %656 = vmatpush1.msra.mxu0 %v655
        %v657 = vand.u32 %v348, 4294901760
        %v658 = vsub.f32 %v348, %v657
        %659 = vmatprep.subr.mxu0 %v658
        %v660 = vand.u32 %v347, 4294901760
        %v661 = vsub.f32 %v347, %v660
        %662 = vmatpush1.msra.mxu0 %v661
        %663 = vmatprep.subr.mxu0 0.0
        %664 = vmatpush1.msra.mxu0 0.0
        %665 = vmatprep.subr.mxu0 0.0
        %666 = vmatpush1.msra.mxu0 0.0
        %667 = vmatprep.subr.mxu0 0.0
        %668 = vmatpush1.msra.mxu0 0.0
        %669 = vmatprep.subr.mxu0 0.0
        %670 = vmatpush1.msra.mxu0 0.0
        %671 = vmatprep.subr.mxu0 0.0
        %672 = vmatpush1.msra.mxu0 0.0
        %673 = vmatprep.subr.mxu0 0.0
        %674 = vmatpush1.msra.mxu0 0.0
        %675 = vmatprep.subr.mxu0 0.0
        %676 = vmatpush1.msra.mxu0 0.0
        %677 = vmatprep.subr.mxu0 0.0
        %678 = vmatpush1.msra.mxu0 0.0
        %679 = vmatprep.subr.mxu0 0.0
        %680 = vmatpush1.msra.mxu0 0.0
        %681 = vmatprep.subr.mxu0 0.0
        %682 = vmatpush1.msra.mxu0 0.0
        %683 = vmatprep.subr.mxu0 0.0
        %684 = vmatpush1.msra.mxu0 0.0
        %685 = vmatprep.subr.mxu0 0.0
        %686 = vmatpush1.msra.mxu0 0.0
        %687 = vmatprep.subr.mxu0 0.0
        %688 = vmatpush1.msra.mxu0 0.0
        %689 = vmatprep.subr.mxu0 0.0
        %690 = vmatpush1.msra.mxu0 0.0
        %691 = vmatprep.subr.mxu0 0.0
        %692 = vmatpush1.msra.mxu0 0.0
        %693 = vmatprep.subr.mxu0 0.0
        %694 = vmatpush1.msra.mxu0 0.0
        %695 = vmatprep.subr.mxu0 0.0
        %696 = vmatpush1.msra.mxu0 0.0
        %697 = vmatprep.subr.mxu0 0.0
        %698 = vmatpush1.msra.mxu0 0.0
        %699 = vmatprep.subr.mxu0 0.0
        %700 = vmatpush1.msra.mxu0 0.0
        %701 = vmatprep.subr.mxu0 0.0
        %702 = vmatpush1.msra.mxu0 0.0
        %703 = vmatprep.subr.mxu0 0.0
        %704 = vmatpush1.msra.mxu0 0.0
        %705 = vmatprep.subr.mxu0 0.0
        %706 = vmatpush1.msra.mxu0 0.0
        %707 = vmatprep.subr.mxu0 0.0
        %708 = vmatpush1.msra.mxu0 0.0
        %709 = vmatprep.mubr.f32.mxu0 0.0
        %v710 = vand.u32 %v351, 4294901760
        %v711 = vsub.f32 %v351, %v710
        %712 = vmatmul.mubr.f32.gmra.mrb[0].mxu0 %v711
        %v713 = vpop.f32.mrb[0].mxu0
        %v714 = vadd.f32 %v605, %v713
        %v715 = vpop.f32.mrb[0].mxu0
        %v716 = vadd.f32 %v607, %v715
        %717 = vdwg.mxu0
        %v718 = vand.u32 %v332, 4294901760
        %719 = vmatprep.subr.mxu0 %v718
        %v720 = vand.u32 %v331, 4294901760
        %721 = vmatpush1.msra.mxu0 %v720
        %v722 = vand.u32 %v334, 4294901760
        %723 = vmatprep.subr.mxu0 %v722
        %v724 = vand.u32 %v333, 4294901760
        %725 = vmatpush1.msra.mxu0 %v724
        %v726 = vand.u32 %v336, 4294901760
        %727 = vmatprep.subr.mxu0 %v726
        %v728 = vand.u32 %v335, 4294901760
        %729 = vmatpush1.msra.mxu0 %v728
        %v730 = vand.u32 %v338, 4294901760
        %731 = vmatprep.subr.mxu0 %v730
        %v732 = vand.u32 %v337, 4294901760
        %733 = vmatpush1.msra.mxu0 %v732
        %v734 = vand.u32 %v340, 4294901760
        %735 = vmatprep.subr.mxu0 %v734
        %v736 = vand.u32 %v339, 4294901760
        %737 = vmatpush1.msra.mxu0 %v736
        %v738 = vand.u32 %v342, 4294901760
        %739 = vmatprep.subr.mxu0 %v738
        %v740 = vand.u32 %v341, 4294901760
        %741 = vmatpush1.msra.mxu0 %v740
        %v742 = vand.u32 %v344, 4294901760
        %743 = vmatprep.subr.mxu0 %v742
        %v744 = vand.u32 %v343, 4294901760
        %745 = vmatpush1.msra.mxu0 %v744
        %v746 = vand.u32 %v346, 4294901760
        %747 = vmatprep.subr.mxu0 %v746
        %v748 = vand.u32 %v345, 4294901760
        %749 = vmatpush1.msra.mxu0 %v748
        %v750 = vand.u32 %v348, 4294901760
        %751 = vmatprep.subr.mxu0 %v750
        %v752 = vand.u32 %v347, 4294901760
        %753 = vmatpush1.msra.mxu0 %v752
        %754 = vmatprep.subr.mxu0 0.0
        %755 = vmatpush1.msra.mxu0 0.0
        %756 = vmatprep.subr.mxu0 0.0
        %757 = vmatpush1.msra.mxu0 0.0
        %758 = vmatprep.subr.mxu0 0.0
        %759 = vmatpush1.msra.mxu0 0.0
        %760 = vmatprep.subr.mxu0 0.0
        %761 = vmatpush1.msra.mxu0 0.0
        %762 = vmatprep.subr.mxu0 0.0
        %763 = vmatpush1.msra.mxu0 0.0
        %764 = vmatprep.subr.mxu0 0.0
        %765 = vmatpush1.msra.mxu0 0.0
        %766 = vmatprep.subr.mxu0 0.0
        %767 = vmatpush1.msra.mxu0 0.0
        %768 = vmatprep.subr.mxu0 0.0
        %769 = vmatpush1.msra.mxu0 0.0
        %770 = vmatprep.subr.mxu0 0.0
        %771 = vmatpush1.msra.mxu0 0.0
        %772 = vmatprep.subr.mxu0 0.0
        %773 = vmatpush1.msra.mxu0 0.0
        %774 = vmatprep.subr.mxu0 0.0
        %775 = vmatpush1.msra.mxu0 0.0
        %776 = vmatprep.subr.mxu0 0.0
        %777 = vmatpush1.msra.mxu0 0.0
        %778 = vmatprep.subr.mxu0 0.0
        %779 = vmatpush1.msra.mxu0 0.0
        %780 = vmatprep.subr.mxu0 0.0
        %781 = vmatpush1.msra.mxu0 0.0
        %782 = vmatprep.subr.mxu0 0.0
        %783 = vmatpush1.msra.mxu0 0.0
        %784 = vmatprep.subr.mxu0 0.0
        %785 = vmatpush1.msra.mxu0 0.0
        %786 = vmatprep.subr.mxu0 0.0
        %787 = vmatpush1.msra.mxu0 0.0
        %788 = vmatprep.subr.mxu0 0.0
        %789 = vmatpush1.msra.mxu0 0.0
        %790 = vmatprep.subr.mxu0 0.0
        %791 = vmatpush1.msra.mxu0 0.0
        %792 = vmatprep.subr.mxu0 0.0
        %793 = vmatpush1.msra.mxu0 0.0
        %794 = vmatprep.subr.mxu0 0.0
        %795 = vmatpush1.msra.mxu0 0.0
        %796 = vmatprep.subr.mxu0 0.0
        %797 = vmatpush1.msra.mxu0 0.0
        %798 = vmatprep.subr.mxu0 0.0
        %799 = vmatpush1.msra.mxu0 0.0
        %800 = vmatprep.mubr.f32.mxu0 0.0
        %v801 = vand.u32 %v351, 4294901760
        %v802 = vsub.f32 %v351, %v801
        %v803 = vand.u32 %v802, 4294901760
        %804 = vmatmul.mubr.f32.gmra.mrb[0].mxu0 %v803
        %v805 = vpop.f32.mrb[0].mxu0
        %v806 = vadd.f32 %v714, %v805
        %v807 = vpop.f32.mrb[0].mxu0
        %v808 = vadd.f32 %v716, %v807
        %809 = vdwg.mxu0
        %v810 = vand.u32 %v332, 4294901760
        %v811 = vsub.f32 %v332, %v810
        %v812 = vand.u32 %v811, 4294901760
        %813 = vmatprep.subr.mxu0 %v812
        %v814 = vand.u32 %v331, 4294901760
        %v815 = vsub.f32 %v331, %v814
        %v816 = vand.u32 %v815, 4294901760
        %817 = vmatpush1.msra.mxu0 %v816
        %v818 = vand.u32 %v334, 4294901760
        %v819 = vsub.f32 %v334, %v818
        %v820 = vand.u32 %v819, 4294901760
        %821 = vmatprep.subr.mxu0 %v820
        %v822 = vand.u32 %v333, 4294901760
        %v823 = vsub.f32 %v333, %v822
        %v824 = vand.u32 %v823, 4294901760
        %825 = vmatpush1.msra.mxu0 %v824
        %v826 = vand.u32 %v336, 4294901760
        %v827 = vsub.f32 %v336, %v826
        %v828 = vand.u32 %v827, 4294901760
        %829 = vmatprep.subr.mxu0 %v828
        %v830 = vand.u32 %v335, 4294901760
        %v831 = vsub.f32 %v335, %v830
        %v832 = vand.u32 %v831, 4294901760
        %833 = vmatpush1.msra.mxu0 %v832
        %v834 = vand.u32 %v338, 4294901760
        %v835 = vsub.f32 %v338, %v834
        %v836 = vand.u32 %v835, 4294901760
        %837 = vmatprep.subr.mxu0 %v836
        %v838 = vand.u32 %v337, 4294901760
        %v839 = vsub.f32 %v337, %v838
        %v840 = vand.u32 %v839, 4294901760
        %841 = vmatpush1.msra.mxu0 %v840
        %v842 = vand.u32 %v340, 4294901760
        %v843 = vsub.f32 %v340, %v842
        %v844 = vand.u32 %v843, 4294901760
        %845 = vmatprep.subr.mxu0 %v844
        %v846 = vand.u32 %v339, 4294901760
        %v847 = vsub.f32 %v339, %v846
        %v848 = vand.u32 %v847, 4294901760
        %849 = vmatpush1.msra.mxu0 %v848
        %v850 = vand.u32 %v342, 4294901760
        %v851 = vsub.f32 %v342, %v850
        %v852 = vand.u32 %v851, 4294901760
        %853 = vmatprep.subr.mxu0 %v852
        %v854 = vand.u32 %v341, 4294901760
        %v855 = vsub.f32 %v341, %v854
        %v856 = vand.u32 %v855, 4294901760
        %857 = vmatpush1.msra.mxu0 %v856
        %v858 = vand.u32 %v344, 4294901760
        %v859 = vsub.f32 %v344, %v858
        %v860 = vand.u32 %v859, 4294901760
        %861 = vmatprep.subr.mxu0 %v860
        %v862 = vand.u32 %v343, 4294901760
        %v863 = vsub.f32 %v343, %v862
        %v864 = vand.u32 %v863, 4294901760
        %865 = vmatpush1.msra.mxu0 %v864
        %v866 = vand.u32 %v346, 4294901760
        %v867 = vsub.f32 %v346, %v866
        %v868 = vand.u32 %v867, 4294901760
        %869 = vmatprep.subr.mxu0 %v868
        %v870 = vand.u32 %v345, 4294901760
        %v871 = vsub.f32 %v345, %v870
        %v872 = vand.u32 %v871, 4294901760
        %873 = vmatpush1.msra.mxu0 %v872
        %v874 = vand.u32 %v348, 4294901760
        %v875 = vsub.f32 %v348, %v874
        %v876 = vand.u32 %v875, 4294901760
        %877 = vmatprep.subr.mxu0 %v876
        %v878 = vand.u32 %v347, 4294901760
        %v879 = vsub.f32 %v347, %v878
        %v880 = vand.u32 %v879, 4294901760
        %881 = vmatpush1.msra.mxu0 %v880
        %882 = vmatprep.subr.mxu0 0.0
        %883 = vmatpush1.msra.mxu0 0.0
        %884 = vmatprep.subr.mxu0 0.0
        %885 = vmatpush1.msra.mxu0 0.0
        %886 = vmatprep.subr.mxu0 0.0
        %887 = vmatpush1.msra.mxu0 0.0
        %888 = vmatprep.subr.mxu0 0.0
        %889 = vmatpush1.msra.mxu0 0.0
        %890 = vmatprep.subr.mxu0 0.0
        %891 = vmatpush1.msra.mxu0 0.0
        %892 = vmatprep.subr.mxu0 0.0
        %893 = vmatpush1.msra.mxu0 0.0
        %894 = vmatprep.subr.mxu0 0.0
        %895 = vmatpush1.msra.mxu0 0.0
        %896 = vmatprep.subr.mxu0 0.0
        %897 = vmatpush1.msra.mxu0 0.0
        %898 = vmatprep.subr.mxu0 0.0
        %899 = vmatpush1.msra.mxu0 0.0
        %900 = vmatprep.subr.mxu0 0.0
        %901 = vmatpush1.msra.mxu0 0.0
        %902 = vmatprep.subr.mxu0 0.0
        %903 = vmatpush1.msra.mxu0 0.0
        %904 = vmatprep.subr.mxu0 0.0
        %905 = vmatpush1.msra.mxu0 0.0
        %906 = vmatprep.subr.mxu0 0.0
        %907 = vmatpush1.msra.mxu0 0.0
        %908 = vmatprep.subr.mxu0 0.0
        %909 = vmatpush1.msra.mxu0 0.0
        %910 = vmatprep.subr.mxu0 0.0
        %911 = vmatpush1.msra.mxu0 0.0
        %912 = vmatprep.subr.mxu0 0.0
        %913 = vmatpush1.msra.mxu0 0.0
        %914 = vmatprep.subr.mxu0 0.0
        %915 = vmatpush1.msra.mxu0 0.0
        %916 = vmatprep.subr.mxu0 0.0
        %917 = vmatpush1.msra.mxu0 0.0
        %918 = vmatprep.subr.mxu0 0.0
        %919 = vmatpush1.msra.mxu0 0.0
        %920 = vmatprep.subr.mxu0 0.0
        %921 = vmatpush1.msra.mxu0 0.0
        %922 = vmatprep.subr.mxu0 0.0
        %923 = vmatpush1.msra.mxu0 0.0
        %924 = vmatprep.subr.mxu0 0.0
        %925 = vmatpush1.msra.mxu0 0.0
        %926 = vmatprep.subr.mxu0 0.0
        %927 = vmatpush1.msra.mxu0 0.0
        %928 = vmatprep.mubr.f32.mxu0 0.0
        %v929 = vand.u32 %v351, 4294901760
        %930 = vmatmul.mubr.f32.gmra.mrb[0].mxu0 %v929
        %v931 = vpop.f32.mrb[0].mxu0
        %v932 = vadd.f32 %v806, %v931
        %v933 = vpop.f32.mrb[0].mxu0
        %v934 = vadd.f32 %v808, %v933
        %935 = vdwg.mxu0
        %v936 = vand.u32 %v332, 4294901760
        %937 = vmatprep.subr.mxu0 %v936
        %v938 = vand.u32 %v331, 4294901760
        %939 = vmatpush1.msra.mxu0 %v938
        %v940 = vand.u32 %v334, 4294901760
        %941 = vmatprep.subr.mxu0 %v940
        %v942 = vand.u32 %v333, 4294901760
        %943 = vmatpush1.msra.mxu0 %v942
        %v944 = vand.u32 %v336, 4294901760
        %945 = vmatprep.subr.mxu0 %v944
        %v946 = vand.u32 %v335, 4294901760
        %947 = vmatpush1.msra.mxu0 %v946
        %v948 = vand.u32 %v338, 4294901760
        %949 = vmatprep.subr.mxu0 %v948
        %v950 = vand.u32 %v337, 4294901760
        %951 = vmatpush1.msra.mxu0 %v950
        %v952 = vand.u32 %v340, 4294901760
        %953 = vmatprep.subr.mxu0 %v952
        %v954 = vand.u32 %v339, 4294901760
        %955 = vmatpush1.msra.mxu0 %v954
        %v956 = vand.u32 %v342, 4294901760
        %957 = vmatprep.subr.mxu0 %v956
        %v958 = vand.u32 %v341, 4294901760
        %959 = vmatpush1.msra.mxu0 %v958
        %v960 = vand.u32 %v344, 4294901760
        %961 = vmatprep.subr.mxu0 %v960
        %v962 = vand.u32 %v343, 4294901760
        %963 = vmatpush1.msra.mxu0 %v962
        %v964 = vand.u32 %v346, 4294901760
        %965 = vmatprep.subr.mxu0 %v964
        %v966 = vand.u32 %v345, 4294901760
        %967 = vmatpush1.msra.mxu0 %v966
        %v968 = vand.u32 %v348, 4294901760
        %969 = vmatprep.subr.mxu0 %v968
        %v970 = vand.u32 %v347, 4294901760
        %971 = vmatpush1.msra.mxu0 %v970
        %972 = vmatprep.subr.mxu0 0.0
        %973 = vmatpush1.msra.mxu0 0.0
        %974 = vmatprep.subr.mxu0 0.0
        %975 = vmatpush1.msra.mxu0 0.0
        %976 = vmatprep.subr.mxu0 0.0
        %977 = vmatpush1.msra.mxu0 0.0
        %978 = vmatprep.subr.mxu0 0.0
        %979 = vmatpush1.msra.mxu0 0.0
        %980 = vmatprep.subr.mxu0 0.0
        %981 = vmatpush1.msra.mxu0 0.0
        %982 = vmatprep.subr.mxu0 0.0
        %983 = vmatpush1.msra.mxu0 0.0
        %984 = vmatprep.subr.mxu0 0.0
        %985 = vmatpush1.msra.mxu0 0.0
        %986 = vmatprep.subr.mxu0 0.0
        %987 = vmatpush1.msra.mxu0 0.0
        %988 = vmatprep.subr.mxu0 0.0
        %989 = vmatpush1.msra.mxu0 0.0
        %990 = vmatprep.subr.mxu0 0.0
        %991 = vmatpush1.msra.mxu0 0.0
        %992 = vmatprep.subr.mxu0 0.0
        %993 = vmatpush1.msra.mxu0 0.0
        %994 = vmatprep.subr.mxu0 0.0
        %995 = vmatpush1.msra.mxu0 0.0
        %996 = vmatprep.subr.mxu0 0.0
        %997 = vmatpush1.msra.mxu0 0.0
        %998 = vmatprep.subr.mxu0 0.0
        %999 = vmatpush1.msra.mxu0 0.0
        %1000 = vmatprep.subr.mxu0 0.0
        %1001 = vmatpush1.msra.mxu0 0.0
        %1002 = vmatprep.subr.mxu0 0.0
        %1003 = vmatpush1.msra.mxu0 0.0
        %1004 = vmatprep.subr.mxu0 0.0
        %1005 = vmatpush1.msra.mxu0 0.0
        %1006 = vmatprep.subr.mxu0 0.0
        %1007 = vmatpush1.msra.mxu0 0.0
        %1008 = vmatprep.subr.mxu0 0.0
        %1009 = vmatpush1.msra.mxu0 0.0
        %1010 = vmatprep.subr.mxu0 0.0
        %1011 = vmatpush1.msra.mxu0 0.0
        %1012 = vmatprep.subr.mxu0 0.0
        %1013 = vmatpush1.msra.mxu0 0.0
        %1014 = vmatprep.subr.mxu0 0.0
        %1015 = vmatpush1.msra.mxu0 0.0
        %1016 = vmatprep.subr.mxu0 0.0
        %1017 = vmatpush1.msra.mxu0 0.0
        %1018 = vmatprep.mubr.f32.mxu0 0.0
        %v1019 = vand.u32 %v351, 4294901760
        %1020 = vmatmul.mubr.f32.gmra.mrb[0].mxu0 %v1019
        %v1021 = vpop.f32.mrb[0].mxu0
        %v1022 = vadd.f32 %v932, %v1021
        %v1023 = vpop.f32.mrb[0].mxu0
        %v1024 = vadd.f32 %v934, %v1023
        %1025 = vdwg.mxu0
        %vm1026 = vcmask 1043456
        %v1027 = vsel %vm1026, %v1022, 0.0
        %v1028 = vsel %vm1026, %v1024, 0.0
        %v1029 = vadd.f32 %v1027, %v1028
        %1030 = vadd.xlane.f32.xlu0 %v1029
        %v1031 = vpop.xlane.xlu0 %1030
        %v1032 = vrcp.pop 256.0
        %v1033 = vmul.f32 %v1031, %v1032
        %v1034 = vsub.f32 %v1022, %v1033
        %v1035 = vsub.f32 %v1024, %v1033
        %v1036 = vmul.f32 %v1034, %v1034
        %v1037 = vmul.f32 %v1035, %v1035
        %v1038 = vsel %vm1026, %v1036, 0.0
        %v1039 = vsel %vm1026, %v1037, 0.0
        %v1040 = vadd.f32 %v1038, %v1039
        %1041 = vadd.xlane.f32.xlu0 %v1040
        %v1042 = vpop.xlane.xlu0 %1041
        %v1043 = vmul.f32 %v1042, %v1032
        %v1044 = vadd.f32 %v1043, 1e-05
        %v1045 = vrsqrt.pop %v1044
        %v1046 = vmul.f32 %v1034, %v1045
        %v1047 = vmul.f32 %v1035, %v1045
        %v1048 = vmax.f32 %v1046, 0.0
        %v1049 = vmax.f32 %v1047, 0.0
        %v1050 = vadd.f32 %v181, %v1048
        %v1051 = vadd.f32 %v182, %v1049
        %v1054 = vcombine.low %v1050, %v1051
        %1056 = vst [vmem:[%s172] sm:$0xff] %v1054
        %s1057 = sand.u32 %s75, 1
        %s1058 = scalar_lea.sflag [#allocation6], %s1057
        %s1059 = sand.u32 %s75, 1
        %s1060 = smul.addr %s1059, 8
        %s1061 = scalar_lea.vmem [#allocation9], %s1060
        // Predicated region
        $region37: #{tpu_custom_call.1} parent=27 // pred_check
          %p1062 = pneg %p85
        $region38: #{tpu_custom_call.1} parent=27 // pred_check_branch
          %1064 = sbr.rel (%p1062) target = $region40
        $region39: #{tpu_custom_call.1} parent=27 // pred_region
          %s1066 = ssub.s32 128, 128
          %1067 = vsyncadd %s1058, %s1066
          %s1068 = smul.addr %s20, 2
          %s1069 = smul.addr %s1068, 64
          %s1070 = scalar_lea.hbm %s2, %s1069
          %s1072 = sshll.u32 %s1061, 4
          %s1073 = int_to_ptr.vmem [resolvable:$true] %s1072
          %1075 = dma.vmem_to_hbm [thread:$0]  %s1073, 128, %s1070, %s1058
        $region40: #{tpu_custom_call.1} parent=27 // pred_fallthru
          _
      $region28: #{tpu_custom_call.1} parent=5 // pred_fallthru
        _
      %p1076 = scmp.le.s32.totalorder 2, %s15
      // Predicated region
      $region41: #{tpu_custom_call.1} parent=5 // pred_check
        %p1077 = pneg %p1076
      $region42: #{tpu_custom_call.1} parent=5 // pred_check_branch
        %1079 = sbr.rel (%p1077) target = $region44
      $region43: #{tpu_custom_call.1} parent=5 // pred_region
        %s1080 = ssub.s32 %s15, 2
        // Predicated region
        $region45: #{tpu_custom_call.1} parent=43 // pred_check
          %p1081 = pneg %p91
        $region46: #{tpu_custom_call.1} parent=43 // pred_check_branch
          %1083 = sbr.rel (%p1081) target = $region48
        $region47: #{tpu_custom_call.1} parent=43 // pred_region
          %s1084 = sand.u32 %s76, 1
          %s1085 = scalar_lea.sflag [#allocation6], %s1084
          %s1086 = sand.u32 %s76, 1
          %s1087 = smul.addr %s1086, 8
          %s1088 = scalar_lea.vmem [#allocation9], %s1087
          %1089 = dma.done %s1085, 128
        $region48: #{tpu_custom_call.1} parent=43 // pred_fallthru
          _
      $region44: #{tpu_custom_call.1} parent=5 // pred_fallthru
        _
    $region6: #{tpu_custom_call.1} parent=1 // loop_footer
      %s19 = sadd.s32 1, %s15
    $region7: #{tpu_custom_call.1} parent=1 // loop_footer_branch
      %14 = sbr.rel target = $region3
    $region8: #{tpu_custom_call.1} parent=1 // loop_exit
      _
    %1090 = vsyncpa [#allocation5], 1
    %s1091 = scalar_lea.sflag [#allocation5], 1
    %1092 = vsyncpa %s1091, 1
    %1093 = vsyncpa [#allocation8], 1
    %1094 = vsyncpa [#allocation6], 1
    %s1095 = scalar_lea.sflag [#allocation6], 1
    %1096 = vsyncpa %s1095, 1

</llo_original>
